<compile_context>
chip_gen: v7x
topology: tpu7x:2x2x1
jax: 0.10.0
libtpu: 0.0.40
codegen_flags: <defaults>
</compile_context>

<pallas_src>
import jax
import jax.numpy as jnp
from jax.experimental import pallas as pl
from jax.experimental.pallas import tpu as pltpu

# ----------------------------- model dims -----------------------------------
B = 2            # batch
C = 4            # channels
H = W = 16       # spatial
HW = H * W       # 256
CHW = C * HW     # 1024 (K of the fused backbone matmul)
HIDDEN = 32      # feature dim produced by extract_feat
NUM_CLASSES = 8  # head output

ROWS = 8         # batch rows padded to one full sublane tile
P_COLS = 128     # lane-dense parameter slab / output width
NEG_BIG = -1e30  # logits value for padded class columns (exp -> 0)


def _round_up(x, m):
    return (x + m - 1) // m * m


# Packed-parameter slab layout (row offsets 8-aligned).
ROW_W1 = 0                                     # [CHW, HIDDEN] in cols 0..HIDDEN-1 (w1/HW expanded)
ROW_B1 = _round_up(ROW_W1 + CHW, 8)            # [1, HIDDEN] in cols 0..HIDDEN-1, zeros elsewhere
ROW_W2 = _round_up(ROW_B1 + 1, 8)              # [P_COLS, P_COLS]; rows 0..HIDDEN-1 / cols 0..NUM_CLASSES-1 valid
ROW_B2 = _round_up(ROW_W2 + P_COLS, 8)         # [1, P_COLS]; cols >= NUM_CLASSES hold NEG_BIG
P_ROWS = _round_up(ROW_B2 + 1, 8)              # total rows


# ----------------------------- Pallas kernel ---------------------------------
def fused_kernel(x_ref, p_ref, probs_ref, feat_ref):
    """Fused extract_feat + simple_test.

    x_ref     : [ROWS, CHW]    f32 (NCHW flattened per image; rows >= B are zero)
    p_ref     : [P_ROWS, 128]  f32 packed, lane-dense parameter slab
    probs_ref : [ROWS, 128]    f32 (cols 0..NUM_CLASSES-1 valid)
    feat_ref  : [ROWS, 128]    f32 (cols 0..HIDDEN-1 valid)
    """
    x = x_ref[...]                                            # [ROWS, CHW]

    # Backbone: GAP + Linear fused into one K=1024 matmul (1/HW folded into W1).
    w1 = p_ref[pl.ds(ROW_W1, CHW), :]                         # [CHW, 128] (pad cols zero)
    b1 = p_ref[pl.ds(ROW_B1, 1), :]                           # [1, 128]   (pad cols zero)
    feat = jnp.dot(x, w1, preferred_element_type=jnp.float32) + b1
    feat = jnp.maximum(feat, 0.0)                             # [ROWS, 128], pad cols stay 0
    feat_ref[...] = feat

    # Head: Linear -> softmax.  Padded class columns get logits of -1e30
    # (zero weight + NEG_BIG bias), so exp underflows to exactly 0 and the
    # softmax over 128 lanes equals the softmax over the NUM_CLASSES valid ones.
    w2 = p_ref[pl.ds(ROW_W2, P_COLS), :]                      # [128, 128]
    b2 = p_ref[pl.ds(ROW_B2, 1), :]                           # [1, 128]
    logits = jnp.dot(feat, w2, preferred_element_type=jnp.float32) + b2
    m = jnp.max(logits, axis=-1, keepdims=True)
    e = jnp.exp(logits - m)
    denom = jnp.sum(e, axis=-1, keepdims=True)
    # EUP approximate reciprocal + one Newton-Raphson step: keeps row sums
    # within ~1e-7 while moving the divide off the VALU.
    inv = pl.reciprocal(denom, approx=True)
    inv = inv * (2.0 - denom * inv)
    probs_ref[...] = e * inv


# ----------------------------- jitted wrapper ---------------------------------
_VMEM = pl.BlockSpec(memory_space=pltpu.MemorySpace.VMEM)

_COST = pl.CostEstimate(
    flops=2 * B * (CHW * HIDDEN + HIDDEN * NUM_CLASSES),
    transcendentals=B * NUM_CLASSES,
    bytes_accessed=(ROWS * CHW + P_ROWS * P_COLS + 2 * ROWS * P_COLS) * 4,
)


@jax.jit
def _fused_forward(img, params):
    """img: [B, C, H, W] -> (probs [B, NUM_CLASSES], feat [B, HIDDEN])."""
    x2d = img.astype(jnp.float32).reshape(B, CHW)             # contiguous NCHW reshape
    x_pad = jnp.zeros((ROWS, CHW), jnp.float32).at[:B].set(x2d)
    probs_pad, feat_pad = pl.pallas_call(
        fused_kernel,
        out_shape=(jax.ShapeDtypeStruct((ROWS, P_COLS), jnp.float32),
                   jax.ShapeDtypeStruct((ROWS, P_COLS), jnp.float32)),
        in_specs=[_VMEM, _VMEM],
        out_specs=(_VMEM, _VMEM),
        cost_estimate=_COST,
    )(x_pad, params)
    # Lane-dense kernel outputs; the slice back to logical shapes fuses in XLA.
    return probs_pad[:B, :NUM_CLASSES], feat_pad[:B, :HIDDEN]


# ----------------------------- module wrapper --------------------------------
class DABaseClassifierPallas:
    """JAX/Pallas realization of DABaseClassifier's forward()."""

    def __init__(self, key):
        k1, k2, k3, k4 = jax.random.split(key, 4)
        # Deterministic synthetic parameters (shapes implied by the forward).
        self.w1 = jax.random.normal(k1, (C, HIDDEN), jnp.float32) * 0.1
        self.b1 = jax.random.normal(k2, (1, HIDDEN), jnp.float32) * 0.01
        self.w2 = jax.random.normal(k3, (HIDDEN, NUM_CLASSES), jnp.float32) * 0.1
        self.b2 = jax.random.normal(k4, (1, NUM_CLASSES), jnp.float32) * 0.01
        self.params = self._pack_params()

    def _pack_params(self):
        # First-layer weight expanded over the spatial axis with the GAP
        # 1/(H*W) scale folded in:  W1big[c*HW + s, h] = w1[c, h] / HW.
        w1_big = jnp.repeat(self.w1 / float(HW), HW, axis=0)          # [CHW, HIDDEN]

        p = jnp.zeros((P_ROWS, P_COLS), jnp.float32)
        p = p.at[ROW_W1:ROW_W1 + CHW, :HIDDEN].set(w1_big)
        p = p.at[ROW_B1, :HIDDEN].set(self.b1[0])
        p = p.at[ROW_W2:ROW_W2 + HIDDEN, :NUM_CLASSES].set(self.w2)
        # Padded class columns get a huge negative bias so softmax zeroes them.
        p = p.at[ROW_B2, :].set(NEG_BIG)
        p = p.at[ROW_B2, :NUM_CLASSES].set(self.b2[0])
        return p

    # ---- fused single-launch inference path (probs + features) -------------
    def forward_with_feat(self, img, domain='source', test_mode='distance'):
        return _fused_forward(img, self.params)

    # ---- mmcls-style API (all backed by the same fused kernel) -------------
    def extract_feat(self, img):
        """img: [B, C, H, W] NCHW -> features [B, HIDDEN]."""
        return _fused_forward(img, self.params)[1]

    def extract_feats(self, imgs):
        assert isinstance(imgs, list)
        for img in imgs:
            yield self.extract_feat(img)

    def simple_test(self, img, domain, test_mode='distance', **kwargs):
        return _fused_forward(img, self.params)[0]

    def forward_test(self, imgs, domain, test_mode, **kwargs):
        if not isinstance(imgs, list):
            imgs = [imgs]
        if not isinstance(imgs, list):
            raise TypeError(f'imgs must be a list, but got {type(imgs)}')
        if len(imgs) == 1:
            return self.simple_test(imgs[0], domain, test_mode, **kwargs)
        raise NotImplementedError('aug_test has not been implemented')

    def forward(self, img_s, gt_label_s=None, img_t=None, gt_label_t=None,
                domain=None, return_loss=True, test_mode='distance', **kwargs):
        if return_loss:
            # TODO(synk): forward_train is abstract in DABaseClassifier; no
            # concrete loss definition exists in the reference module.
            raise NotImplementedError('forward_train is abstract in DABaseClassifier')
        # Mirrors: domain = torch.Tensor([0]) for 'source' else torch.Tensor([1])
        domain_flag = jnp.array([0.0], jnp.float32) if domain == 'source' \
            else jnp.array([1.0], jnp.float32)
        return self.forward_test(img_s, domain=domain_flag,
                                 test_mode=test_mode, **kwargs)


# ----------------------------- driver ----------------------------------------
if __name__ == "__main__":
    key = jax.random.PRNGKey(0)
    k_img, k_params = jax.random.split(key)
    img = jax.random.normal(k_img, (B, C, H, W), jnp.float32)   # NCHW

    model = DABaseClassifierPallas(k_params)

    # Fused path: class probabilities AND backbone features from ONE pallas_call.
    probs, feat = jax.block_until_ready(
        model.forward_with_feat(img, domain='source'))

    # Standard mmcls-style API (same fused kernel underneath).
    probs_api = jax.block_until_ready(
        model.forward(img, return_loss=False, domain='source',
                      test_mode='distance'))

    # Pure-JAX reference (GAP -> Linear+ReLU -> Linear -> softmax).
    gap = jnp.mean(img.reshape(B, C, HW), axis=-1)
    feat_ref = jnp.maximum(gap @ model.w1 + model.b1, 0.0)
    logits_ref = feat_ref @ model.w2 + model.b2
    probs_ref = jax.nn.softmax(logits_ref, axis=-1)

    assert probs.shape == (B, NUM_CLASSES)
    assert feat.shape == (B, HIDDEN)
    row_sums = jnp.sum(probs, axis=-1)
    assert bool(jnp.all(jnp.abs(row_sums - 1.0) < 1e-5))
    assert bool(jnp.all(jnp.abs(feat - feat_ref) < 1e-3))
    assert bool(jnp.all(jnp.abs(probs - probs_ref) < 1e-3))
    assert bool(jnp.all(jnp.abs(probs_api - probs) < 1e-5))

    print("KERNEL_OK")
</pallas_src>

<mosaic_0001>
module attributes {stable_mosaic.version = 11 : i64} {
  func.func @fused_kernel(%arg0: memref<8x1024xf32, #tpu.memory_space<vmem>>, %arg1: memref<1168x128xf32, #tpu.memory_space<vmem>>, %arg2: memref<8x128xf32, #tpu.memory_space<vmem>>, %arg3: memref<8x128xf32, #tpu.memory_space<vmem>>) attributes {dimension_semantics = [], scalar_prefetch = 0 : i64, scratch_operands = 0 : i64, tpu.core_type = #tpu.core_type<tc>} {
    %c0 = arith.constant 0 : index
    %c0_0 = arith.constant 0 : index
    %0 = vector.load %arg0[%c0, %c0_0] : memref<8x1024xf32, #tpu.memory_space<vmem>>, vector<8x1024xf32>
    %c0_1 = arith.constant 0 : index
    %c0_2 = arith.constant 0 : index
    %1 = vector.load %arg1[%c0_1, %c0_2] : memref<1168x128xf32, #tpu.memory_space<vmem>>, vector<1024x128xf32>
    %c1024 = arith.constant 1024 : index
    %c0_3 = arith.constant 0 : index
    %2 = vector.load %arg1[%c1024, %c0_3] : memref<1168x128xf32, #tpu.memory_space<vmem>>, vector<1x128xf32>
    %cst = arith.constant dense<0.000000e+00> : vector<8x128xf32>
    %3 = tpu.matmul %0, %1, %cst {dimension_numbers = #tpu.dot_dimension_numbers<[1], [0], [0], [1], [0, 0, 1, 1], [], []>} : vector<8x1024xf32>, vector<1024x128xf32>, vector<8x128xf32> -> vector<8x128xf32>
    %4 = vector.broadcast %2 : vector<1x128xf32> to vector<8x128xf32>
    %5 = arith.addf %3, %4 : vector<8x128xf32>
    %cst_4 = arith.constant 0.000000e+00 : f32
    %6 = vector.broadcast %cst_4 : f32 to vector<8x128xf32>
    %7 = arith.maximumf %5, %6 : vector<8x128xf32>
    %c0_5 = arith.constant 0 : index
    %c0_6 = arith.constant 0 : index
    %8 = vector.load %arg3[%c0_5, %c0_6] : memref<8x128xf32, #tpu.memory_space<vmem>>, vector<8x128xf32>
    tpu.vector_store %arg3[%c0_5, %c0_6], %7 {strides = array<i32>} : memref<8x128xf32, #tpu.memory_space<vmem>>, vector<8x128xf32>,
    %c1032 = arith.constant 1032 : index
    %c0_7 = arith.constant 0 : index
    %9 = vector.load %arg1[%c1032, %c0_7] : memref<1168x128xf32, #tpu.memory_space<vmem>>, vector<128x128xf32>
    %c1160 = arith.constant 1160 : index
    %c0_8 = arith.constant 0 : index
    %10 = vector.load %arg1[%c1160, %c0_8] : memref<1168x128xf32, #tpu.memory_space<vmem>>, vector<1x128xf32>
    %cst_9 = arith.constant dense<0.000000e+00> : vector<8x128xf32>
    %11 = tpu.matmul %7, %9, %cst_9 {dimension_numbers = #tpu.dot_dimension_numbers<[1], [0], [0], [1], [0, 0, 1, 1], [], []>} : vector<8x128xf32>, vector<128x128xf32>, vector<8x128xf32> -> vector<8x128xf32>
    %12 = vector.broadcast %10 : vector<1x128xf32> to vector<8x128xf32>
    %13 = arith.addf %11, %12 : vector<8x128xf32>
    %cst_10 = arith.constant dense<0xFF800000> : vector<8xf32>
    %14 = vector.multi_reduction <maximumf>, %13, %cst_10 [1] : vector<8x128xf32> to vector<8xf32>
    %15 = vector.shape_cast %14 : vector<8xf32> to vector<8x1xf32>
    %16 = vector.broadcast %15 : vector<8x1xf32> to vector<8x128xf32>
    %17 = arith.subf %13, %16 : vector<8x128xf32>
    %18 = math.exp %17 : vector<8x128xf32>
    %cst_11 = arith.constant dense<0.000000e+00> : vector<8xf32>
    %19 = vector.multi_reduction <add>, %18, %cst_11 [1] : vector<8x128xf32> to vector<8xf32>
    %20 = vector.shape_cast %19 : vector<8xf32> to vector<8x1xf32>
    %21 = tpu.reciprocal %20 {approx = true} : vector<8x1xf32> -> vector<8x1xf32>
    %22 = arith.mulf %20, %21 : vector<8x1xf32>
    %cst_12 = arith.constant 2.000000e+00 : f32
    %23 = vector.broadcast %cst_12 : f32 to vector<8x1xf32>
    %24 = arith.subf %23, %22 : vector<8x1xf32>
    %25 = arith.mulf %21, %24 : vector<8x1xf32>
    %26 = vector.broadcast %25 : vector<8x1xf32> to vector<8x128xf32>
    %27 = arith.mulf %18, %26 : vector<8x128xf32>
    %c0_13 = arith.constant 0 : index
    %c0_14 = arith.constant 0 : index
    %28 = vector.load %arg2[%c0_13, %c0_14] : memref<8x128xf32, #tpu.memory_space<vmem>>, vector<8x128xf32>
    tpu.vector_store %arg2[%c0_13, %c0_14], %27 {strides = array<i32>} : memref<8x128xf32, #tpu.memory_space<vmem>>, vector<8x128xf32>,
    return
  }
}

</mosaic_0001>

<llo_original>
// kernel: _fused_forward.1
$region0: #{_fused_forward.1}
  #allocation0 [shape = 'u32[]', space=smem, size = 0x4, offset = 0x4, fixed_abs, tag = 'smem constant byte address 0x4 - core index']
  #allocation1 [shape = 'u32[144,128]{1,0:T(1,128)}', space=vmem, size = 0x12000, scoped, tag = 'internal scratch']
  %s0 = inlined_call_operand.vmem [shape: f32[8,1024], index: 0, kind: input, shape index: {}]
  %s1 = inlined_call_operand.hbm [shape: f32[1168,128], index: 1, kind: input, shape index: {}]
  %s2 = inlined_call_operand.vmem [shape: f32[8,128], index: 2, kind: output, shape index: {0}]
  %s3 = inlined_call_operand.vmem [shape: f32[8,128], index: 3, kind: output, shape index: {1}]
  %4 = xla_tuple %s2, %s3
  %s5 = sld [smem:[#allocation0]]
  $region30: #{_fused_forward.1} parent=0
    _
  %s7 = ssub.s32 1, %s5
  %s8 = scalar_select 0, %s7, %s5
  $region1: #{_fused_forward.1} parent=0
    #allocation2 [shape = 'u8[598016]{0}', space=vmem, size = 0x92000, scoped, tag = 'input window, operand 1, single buffered']
    #allocation3 [shape = 's32[1]{0}', space=sflag, size = 0x4, scoped, tag = 'scoped memory for _fused_forward.1']
    %9 = vsyncpa [#allocation3], 0
    // Predicated region
    $region2: #{_fused_forward.1} parent=1 // pred_check
      _
    $region3: #{_fused_forward.1} parent=1 // pred_check_branch
      %11 = sbr.rel (0) target = $region5
    $region4: #{_fused_forward.1} parent=1 // pred_region
      _
    $region5: #{_fused_forward.1} parent=1 // pred_fallthru
      _
    // Predicated region
    $region6: #{_fused_forward.1} parent=1 // pred_check
      _
    $region7: #{_fused_forward.1} parent=1 // pred_check_branch
      %13 = sbr.rel (0) target = $region9
    $region8: #{_fused_forward.1} parent=1 // pred_region
      %s15 = ssub.s32 18688, 18688
      %16 = vsyncadd [#allocation3], %s15
      %s17 = sshll.u32 [#allocation2], 4
      %s18 = int_to_ptr.vmem [resolvable:$true] %s17
      %23 = dma.hbm_to_vmem [thread:$0]  %s1, 18688, %s18, [#allocation3], 128, 128, 8
    $region9: #{_fused_forward.1} parent=1 // pred_fallthru
      _
    // Predicated region
    $region10: #{_fused_forward.1} parent=1 // pred_check
      _
    $region11: #{_fused_forward.1} parent=1 // pred_check_branch
      %25 = sbr.rel (0) target = $region13
    $region12: #{_fused_forward.1} parent=1 // pred_region
      %26 = dma.done [#allocation3], 18688
    $region13: #{_fused_forward.1} parent=1 // pred_fallthru
      _
    %v27 = vld [vmem:[%s0] sm:$0xff]
    %v28 = vld [vmem:[%s0 + $0x8] sm:$0xff]
    %v29 = vld [vmem:[%s0 + $0x10] sm:$0xff]
    %v30 = vld [vmem:[%s0 + $0x18] sm:$0xff]
    %v31 = vld [vmem:[%s0 + $0x20] sm:$0xff]
    %v32 = vld [vmem:[%s0 + $0x28] sm:$0xff]
    %v33 = vld [vmem:[%s0 + $0x30] sm:$0xff]
    %v34 = vld [vmem:[%s0 + $0x38] sm:$0xff]
    %v35 = vld [vmem:[#allocation2] sm:$0xff]
    %v36 = vld [vmem:[#allocation2 + $0x8] sm:$0xff]
    %v37 = vld [vmem:[#allocation2 + $0x10] sm:$0xff]
    %v38 = vld [vmem:[#allocation2 + $0x18] sm:$0xff]
    %v39 = vld [vmem:[#allocation2 + $0x20] sm:$0xff]
    %v40 = vld [vmem:[#allocation2 + $0x28] sm:$0xff]
    %v41 = vld [vmem:[#allocation2 + $0x30] sm:$0xff]
    %v42 = vld [vmem:[#allocation2 + $0x38] sm:$0xff]
    %v43 = vld [vmem:[#allocation2 + $0x40] sm:$0xff]
    %v44 = vld [vmem:[#allocation2 + $0x48] sm:$0xff]
    %v45 = vld [vmem:[#allocation2 + $0x50] sm:$0xff]
    %v46 = vld [vmem:[#allocation2 + $0x58] sm:$0xff]
    %v47 = vld [vmem:[#allocation2 + $0x60] sm:$0xff]
    %v48 = vld [vmem:[#allocation2 + $0x68] sm:$0xff]
    %v49 = vld [vmem:[#allocation2 + $0x70] sm:$0xff]
    %v50 = vld [vmem:[#allocation2 + $0x78] sm:$0xff]
    %v51 = vld [vmem:[#allocation2 + $0x80] sm:$0xff]
    %v52 = vld [vmem:[#allocation2 + $0x88] sm:$0xff]
    %v53 = vld [vmem:[#allocation2 + $0x90] sm:$0xff]
    %v54 = vld [vmem:[#allocation2 + $0x98] sm:$0xff]
    %v55 = vld [vmem:[#allocation2 + $0xa0] sm:$0xff]
    %v56 = vld [vmem:[#allocation2 + $0xa8] sm:$0xff]
    %v57 = vld [vmem:[#allocation2 + $0xb0] sm:$0xff]
    %v58 = vld [vmem:[#allocation2 + $0xb8] sm:$0xff]
    %v59 = vld [vmem:[#allocation2 + $0xc0] sm:$0xff]
    %v60 = vld [vmem:[#allocation2 + $0xc8] sm:$0xff]
    %v61 = vld [vmem:[#allocation2 + $0xd0] sm:$0xff]
    %v62 = vld [vmem:[#allocation2 + $0xd8] sm:$0xff]
    %v63 = vld [vmem:[#allocation2 + $0xe0] sm:$0xff]
    %v64 = vld [vmem:[#allocation2 + $0xe8] sm:$0xff]
    %v65 = vld [vmem:[#allocation2 + $0xf0] sm:$0xff]
    %v66 = vld [vmem:[#allocation2 + $0xf8] sm:$0xff]
    %v67 = vld [vmem:[#allocation2 + $0x100] sm:$0xff]
    %v68 = vld [vmem:[#allocation2 + $0x108] sm:$0xff]
    %v69 = vld [vmem:[#allocation2 + $0x110] sm:$0xff]
    %v70 = vld [vmem:[#allocation2 + $0x118] sm:$0xff]
    %v71 = vld [vmem:[#allocation2 + $0x120] sm:$0xff]
    %v72 = vld [vmem:[#allocation2 + $0x128] sm:$0xff]
    %v73 = vld [vmem:[#allocation2 + $0x130] sm:$0xff]
    %v74 = vld [vmem:[#allocation2 + $0x138] sm:$0xff]
    %v75 = vld [vmem:[#allocation2 + $0x140] sm:$0xff]
    %v76 = vld [vmem:[#allocation2 + $0x148] sm:$0xff]
    %v77 = vld [vmem:[#allocation2 + $0x150] sm:$0xff]
    %v78 = vld [vmem:[#allocation2 + $0x158] sm:$0xff]
    %v79 = vld [vmem:[#allocation2 + $0x160] sm:$0xff]
    %v80 = vld [vmem:[#allocation2 + $0x168] sm:$0xff]
    %v81 = vld [vmem:[#allocation2 + $0x170] sm:$0xff]
    %v82 = vld [vmem:[#allocation2 + $0x178] sm:$0xff]
    %v83 = vld [vmem:[#allocation2 + $0x180] sm:$0xff]
    %v84 = vld [vmem:[#allocation2 + $0x188] sm:$0xff]
    %v85 = vld [vmem:[#allocation2 + $0x190] sm:$0xff]
    %v86 = vld [vmem:[#allocation2 + $0x198] sm:$0xff]
    %v87 = vld [vmem:[#allocation2 + $0x1a0] sm:$0xff]
    %v88 = vld [vmem:[#allocation2 + $0x1a8] sm:$0xff]
    %v89 = vld [vmem:[#allocation2 + $0x1b0] sm:$0xff]
    %v90 = vld [vmem:[#allocation2 + $0x1b8] sm:$0xff]
    %v91 = vld [vmem:[#allocation2 + $0x1c0] sm:$0xff]
    %v92 = vld [vmem:[#allocation2 + $0x1c8] sm:$0xff]
    %v93 = vld [vmem:[#allocation2 + $0x1d0] sm:$0xff]
    %v94 = vld [vmem:[#allocation2 + $0x1d8] sm:$0xff]
    %v95 = vld [vmem:[#allocation2 + $0x1e0] sm:$0xff]
    %v96 = vld [vmem:[#allocation2 + $0x1e8] sm:$0xff]
    %v97 = vld [vmem:[#allocation2 + $0x1f0] sm:$0xff]
    %v98 = vld [vmem:[#allocation2 + $0x1f8] sm:$0xff]
    %v99 = vld [vmem:[#allocation2 + $0x200] sm:$0xff]
    %v100 = vld [vmem:[#allocation2 + $0x208] sm:$0xff]
    %v101 = vld [vmem:[#allocation2 + $0x210] sm:$0xff]
    %v102 = vld [vmem:[#allocation2 + $0x218] sm:$0xff]
    %v103 = vld [vmem:[#allocation2 + $0x220] sm:$0xff]
    %v104 = vld [vmem:[#allocation2 + $0x228] sm:$0xff]
    %v105 = vld [vmem:[#allocation2 + $0x230] sm:$0xff]
    %v106 = vld [vmem:[#allocation2 + $0x238] sm:$0xff]
    %v107 = vld [vmem:[#allocation2 + $0x240] sm:$0xff]
    %v108 = vld [vmem:[#allocation2 + $0x248] sm:$0xff]
    %v109 = vld [vmem:[#allocation2 + $0x250] sm:$0xff]
    %v110 = vld [vmem:[#allocation2 + $0x258] sm:$0xff]
    %v111 = vld [vmem:[#allocation2 + $0x260] sm:$0xff]
    %v112 = vld [vmem:[#allocation2 + $0x268] sm:$0xff]
    %v113 = vld [vmem:[#allocation2 + $0x270] sm:$0xff]
    %v114 = vld [vmem:[#allocation2 + $0x278] sm:$0xff]
    %v115 = vld [vmem:[#allocation2 + $0x280] sm:$0xff]
    %v116 = vld [vmem:[#allocation2 + $0x288] sm:$0xff]
    %v117 = vld [vmem:[#allocation2 + $0x290] sm:$0xff]
    %v118 = vld [vmem:[#allocation2 + $0x298] sm:$0xff]
    %v119 = vld [vmem:[#allocation2 + $0x2a0] sm:$0xff]
    %v120 = vld [vmem:[#allocation2 + $0x2a8] sm:$0xff]
    %v121 = vld [vmem:[#allocation2 + $0x2b0] sm:$0xff]
    %v122 = vld [vmem:[#allocation2 + $0x2b8] sm:$0xff]
    %v123 = vld [vmem:[#allocation2 + $0x2c0] sm:$0xff]
    %v124 = vld [vmem:[#allocation2 + $0x2c8] sm:$0xff]
    %v125 = vld [vmem:[#allocation2 + $0x2d0] sm:$0xff]
    %v126 = vld [vmem:[#allocation2 + $0x2d8] sm:$0xff]
    %v127 = vld [vmem:[#allocation2 + $0x2e0] sm:$0xff]
    %v128 = vld [vmem:[#allocation2 + $0x2e8] sm:$0xff]
    %v129 = vld [vmem:[#allocation2 + $0x2f0] sm:$0xff]
    %v130 = vld [vmem:[#allocation2 + $0x2f8] sm:$0xff]
    %v131 = vld [vmem:[#allocation2 + $0x300] sm:$0xff]
    %v132 = vld [vmem:[#allocation2 + $0x308] sm:$0xff]
    %v133 = vld [vmem:[#allocation2 + $0x310] sm:$0xff]
    %v134 = vld [vmem:[#allocation2 + $0x318] sm:$0xff]
    %v135 = vld [vmem:[#allocation2 + $0x320] sm:$0xff]
    %v136 = vld [vmem:[#allocation2 + $0x328] sm:$0xff]
    %v137 = vld [vmem:[#allocation2 + $0x330] sm:$0xff]
    %v138 = vld [vmem:[#allocation2 + $0x338] sm:$0xff]
    %v139 = vld [vmem:[#allocation2 + $0x340] sm:$0xff]
    %v140 = vld [vmem:[#allocation2 + $0x348] sm:$0xff]
    %v141 = vld [vmem:[#allocation2 + $0x350] sm:$0xff]
    %v142 = vld [vmem:[#allocation2 + $0x358] sm:$0xff]
    %v143 = vld [vmem:[#allocation2 + $0x360] sm:$0xff]
    %v144 = vld [vmem:[#allocation2 + $0x368] sm:$0xff]
    %v145 = vld [vmem:[#allocation2 + $0x370] sm:$0xff]
    %v146 = vld [vmem:[#allocation2 + $0x378] sm:$0xff]
    %v147 = vld [vmem:[#allocation2 + $0x380] sm:$0xff]
    %v148 = vld [vmem:[#allocation2 + $0x388] sm:$0xff]
    %v149 = vld [vmem:[#allocation2 + $0x390] sm:$0xff]
    %v150 = vld [vmem:[#allocation2 + $0x398] sm:$0xff]
    %v151 = vld [vmem:[#allocation2 + $0x3a0] sm:$0xff]
    %v152 = vld [vmem:[#allocation2 + $0x3a8] sm:$0xff]
    %v153 = vld [vmem:[#allocation2 + $0x3b0] sm:$0xff]
    %v154 = vld [vmem:[#allocation2 + $0x3b8] sm:$0xff]
    %v155 = vld [vmem:[#allocation2 + $0x3c0] sm:$0xff]
    %v156 = vld [vmem:[#allocation2 + $0x3c8] sm:$0xff]
    %v157 = vld [vmem:[#allocation2 + $0x3d0] sm:$0xff]
    %v158 = vld [vmem:[#allocation2 + $0x3d8] sm:$0xff]
    %v159 = vld [vmem:[#allocation2 + $0x3e0] sm:$0xff]
    %v160 = vld [vmem:[#allocation2 + $0x3e8] sm:$0xff]
    %v161 = vld [vmem:[#allocation2 + $0x3f0] sm:$0xff]
    %v162 = vld [vmem:[#allocation2 + $0x3f8] sm:$0xff]
    %v163 = vld [vmem:[#allocation2 + $0x400] sm:$0x1]
    %v164 = vlaneseq
    %v165 = vshrl.u32 %v164, 7
    %v166 = vsub.s32 0, %v165
    %v167 = vrot.slane %v163, %v166
    %168 = vmatprep.subr.mxu0 0.0
    %169 = vmatpush1.msra.mxu0 %v35
    %170 = vmatprep.subr.mxu0 0.0
    %171 = vmatpush1.msra.mxu0 %v36
    %172 = vmatprep.subr.mxu0 0.0
    %173 = vmatpush1.msra.mxu0 %v37
    %174 = vmatprep.subr.mxu0 0.0
    %175 = vmatpush1.msra.mxu0 %v38
    %176 = vmatprep.subr.mxu0 0.0
    %177 = vmatpush1.msra.mxu0 %v39
    %178 = vmatprep.subr.mxu0 0.0
    %179 = vmatpush1.msra.mxu0 %v40
    %180 = vmatprep.subr.mxu0 0.0
    %181 = vmatpush1.msra.mxu0 %v41
    %182 = vmatprep.subr.mxu0 0.0
    %183 = vmatpush1.msra.mxu0 %v42
    %184 = vmatprep.subr.mxu0 0.0
    %185 = vmatpush1.msra.mxu0 %v43
    %186 = vmatprep.subr.mxu0 0.0
    %187 = vmatpush1.msra.mxu0 %v44
    %188 = vmatprep.subr.mxu0 0.0
    %189 = vmatpush1.msra.mxu0 %v45
    %190 = vmatprep.subr.mxu0 0.0
    %191 = vmatpush1.msra.mxu0 %v46
    %192 = vmatprep.subr.mxu0 0.0
    %193 = vmatpush1.msra.mxu0 %v47
    %194 = vmatprep.subr.mxu0 0.0
    %195 = vmatpush1.msra.mxu0 %v48
    %196 = vmatprep.subr.mxu0 0.0
    %197 = vmatpush1.msra.mxu0 %v49
    %198 = vmatprep.subr.mxu0 0.0
    %199 = vmatpush1.msra.mxu0 %v50
    %200 = vmatprep.subr.mxu0 0.0
    %201 = vmatpush1.msra.mxu0 %v51
    %202 = vmatprep.subr.mxu0 0.0
    %203 = vmatpush1.msra.mxu0 %v52
    %204 = vmatprep.subr.mxu0 0.0
    %205 = vmatpush1.msra.mxu0 %v53
    %206 = vmatprep.subr.mxu0 0.0
    %207 = vmatpush1.msra.mxu0 %v54
    %208 = vmatprep.subr.mxu0 0.0
    %209 = vmatpush1.msra.mxu0 %v55
    %210 = vmatprep.subr.mxu0 0.0
    %211 = vmatpush1.msra.mxu0 %v56
    %212 = vmatprep.subr.mxu0 0.0
    %213 = vmatpush1.msra.mxu0 %v57
    %214 = vmatprep.subr.mxu0 0.0
    %215 = vmatpush1.msra.mxu0 %v58
    %216 = vmatprep.subr.mxu0 0.0
    %217 = vmatpush1.msra.mxu0 %v59
    %218 = vmatprep.subr.mxu0 0.0
    %219 = vmatpush1.msra.mxu0 %v60
    %220 = vmatprep.subr.mxu0 0.0
    %221 = vmatpush1.msra.mxu0 %v61
    %222 = vmatprep.subr.mxu0 0.0
    %223 = vmatpush1.msra.mxu0 %v62
    %224 = vmatprep.subr.mxu0 0.0
    %225 = vmatpush1.msra.mxu0 %v63
    %226 = vmatprep.subr.mxu0 0.0
    %227 = vmatpush1.msra.mxu0 %v64
    %228 = vmatprep.subr.mxu0 0.0
    %229 = vmatpush1.msra.mxu0 %v65
    %230 = vmatprep.subr.mxu0 0.0
    %231 = vmatpush1.msra.mxu0 %v66
    %232 = vmatprep.mubr.f32.mxu0 %v28
    %233 = vmatmul.mubr.f32.gmra.mrb[0].mxu0 %v27
    %v234 = vpop.f32.mrb[0].mxu0
    %v235 = vadd.f32 %v167, %v234
    %v236 = vpop.f32.mrb[0].mxu0
    %237 = vdwg.mxu0
    %238 = vmatprep.subr.mxu0 0.0
    %239 = vmatpush1.msra.mxu0 %v67
    %240 = vmatprep.subr.mxu0 0.0
    %241 = vmatpush1.msra.mxu0 %v68
    %242 = vmatprep.subr.mxu0 0.0
    %243 = vmatpush1.msra.mxu0 %v69
    %244 = vmatprep.subr.mxu0 0.0
    %245 = vmatpush1.msra.mxu0 %v70
    %246 = vmatprep.subr.mxu0 0.0
    %247 = vmatpush1.msra.mxu0 %v71
    %248 = vmatprep.subr.mxu0 0.0
    %249 = vmatpush1.msra.mxu0 %v72
    %250 = vmatprep.subr.mxu0 0.0
    %251 = vmatpush1.msra.mxu0 %v73
    %252 = vmatprep.subr.mxu0 0.0
    %253 = vmatpush1.msra.mxu0 %v74
    %254 = vmatprep.subr.mxu0 0.0
    %255 = vmatpush1.msra.mxu0 %v75
    %256 = vmatprep.subr.mxu0 0.0
    %257 = vmatpush1.msra.mxu0 %v76
    %258 = vmatprep.subr.mxu0 0.0
    %259 = vmatpush1.msra.mxu0 %v77
    %260 = vmatprep.subr.mxu0 0.0
    %261 = vmatpush1.msra.mxu0 %v78
    %262 = vmatprep.subr.mxu0 0.0
    %263 = vmatpush1.msra.mxu0 %v79
    %264 = vmatprep.subr.mxu0 0.0
    %265 = vmatpush1.msra.mxu0 %v80
    %266 = vmatprep.subr.mxu0 0.0
    %267 = vmatpush1.msra.mxu0 %v81
    %268 = vmatprep.subr.mxu0 0.0
    %269 = vmatpush1.msra.mxu0 %v82
    %270 = vmatprep.subr.mxu0 0.0
    %271 = vmatpush1.msra.mxu0 %v83
    %272 = vmatprep.subr.mxu0 0.0
    %273 = vmatpush1.msra.mxu0 %v84
    %274 = vmatprep.subr.mxu0 0.0
    %275 = vmatpush1.msra.mxu0 %v85
    %276 = vmatprep.subr.mxu0 0.0
    %277 = vmatpush1.msra.mxu0 %v86
    %278 = vmatprep.subr.mxu0 0.0
    %279 = vmatpush1.msra.mxu0 %v87
    %280 = vmatprep.subr.mxu0 0.0
    %281 = vmatpush1.msra.mxu0 %v88
    %282 = vmatprep.subr.mxu0 0.0
    %283 = vmatpush1.msra.mxu0 %v89
    %284 = vmatprep.subr.mxu0 0.0
    %285 = vmatpush1.msra.mxu0 %v90
    %286 = vmatprep.subr.mxu0 0.0
    %287 = vmatpush1.msra.mxu0 %v91
    %288 = vmatprep.subr.mxu0 0.0
    %289 = vmatpush1.msra.mxu0 %v92
    %290 = vmatprep.subr.mxu0 0.0
    %291 = vmatpush1.msra.mxu0 %v93
    %292 = vmatprep.subr.mxu0 0.0
    %293 = vmatpush1.msra.mxu0 %v94
    %294 = vmatprep.subr.mxu0 0.0
    %295 = vmatpush1.msra.mxu0 %v95
    %296 = vmatprep.subr.mxu0 0.0
    %297 = vmatpush1.msra.mxu0 %v96
    %298 = vmatprep.subr.mxu0 0.0
    %299 = vmatpush1.msra.mxu0 %v97
    %300 = vmatprep.subr.mxu0 0.0
    %301 = vmatpush1.msra.mxu0 %v98
    %302 = vmatprep.mubr.f32.mxu0 %v30
    %303 = vmatmul.mubr.f32.gmra.mrb[0].mxu0 %v29
    %v304 = vpop.f32.mrb[0].mxu0
    %v305 = vadd.f32 %v235, %v304
    %v306 = vpop.f32.mrb[0].mxu0
    %307 = vdwg.mxu0
    %308 = vmatprep.subr.mxu0 0.0
    %309 = vmatpush1.msra.mxu0 %v99
    %310 = vmatprep.subr.mxu0 0.0
    %311 = vmatpush1.msra.mxu0 %v100
    %312 = vmatprep.subr.mxu0 0.0
    %313 = vmatpush1.msra.mxu0 %v101
    %314 = vmatprep.subr.mxu0 0.0
    %315 = vmatpush1.msra.mxu0 %v102
    %316 = vmatprep.subr.mxu0 0.0
    %317 = vmatpush1.msra.mxu0 %v103
    %318 = vmatprep.subr.mxu0 0.0
    %319 = vmatpush1.msra.mxu0 %v104
    %320 = vmatprep.subr.mxu0 0.0
    %321 = vmatpush1.msra.mxu0 %v105
    %322 = vmatprep.subr.mxu0 0.0
    %323 = vmatpush1.msra.mxu0 %v106
    %324 = vmatprep.subr.mxu0 0.0
    %325 = vmatpush1.msra.mxu0 %v107
    %326 = vmatprep.subr.mxu0 0.0
    %327 = vmatpush1.msra.mxu0 %v108
    %328 = vmatprep.subr.mxu0 0.0
    %329 = vmatpush1.msra.mxu0 %v109
    %330 = vmatprep.subr.mxu0 0.0
    %331 = vmatpush1.msra.mxu0 %v110
    %332 = vmatprep.subr.mxu0 0.0
    %333 = vmatpush1.msra.mxu0 %v111
    %334 = vmatprep.subr.mxu0 0.0
    %335 = vmatpush1.msra.mxu0 %v112
    %336 = vmatprep.subr.mxu0 0.0
    %337 = vmatpush1.msra.mxu0 %v113
    %338 = vmatprep.subr.mxu0 0.0
    %339 = vmatpush1.msra.mxu0 %v114
    %340 = vmatprep.subr.mxu0 0.0
    %341 = vmatpush1.msra.mxu0 %v115
    %342 = vmatprep.subr.mxu0 0.0
    %343 = vmatpush1.msra.mxu0 %v116
    %344 = vmatprep.subr.mxu0 0.0
    %345 = vmatpush1.msra.mxu0 %v117
    %346 = vmatprep.subr.mxu0 0.0
    %347 = vmatpush1.msra.mxu0 %v118
    %348 = vmatprep.subr.mxu0 0.0
    %349 = vmatpush1.msra.mxu0 %v119
    %350 = vmatprep.subr.mxu0 0.0
    %351 = vmatpush1.msra.mxu0 %v120
    %352 = vmatprep.subr.mxu0 0.0
    %353 = vmatpush1.msra.mxu0 %v121
    %354 = vmatprep.subr.mxu0 0.0
    %355 = vmatpush1.msra.mxu0 %v122
    %356 = vmatprep.subr.mxu0 0.0
    %357 = vmatpush1.msra.mxu0 %v123
    %358 = vmatprep.subr.mxu0 0.0
    %359 = vmatpush1.msra.mxu0 %v124
    %360 = vmatprep.subr.mxu0 0.0
    %361 = vmatpush1.msra.mxu0 %v125
    %362 = vmatprep.subr.mxu0 0.0
    %363 = vmatpush1.msra.mxu0 %v126
    %364 = vmatprep.subr.mxu0 0.0
    %365 = vmatpush1.msra.mxu0 %v127
    %366 = vmatprep.subr.mxu0 0.0
    %367 = vmatpush1.msra.mxu0 %v128
    %368 = vmatprep.subr.mxu0 0.0
    %369 = vmatpush1.msra.mxu0 %v129
    %370 = vmatprep.subr.mxu0 0.0
    %371 = vmatpush1.msra.mxu0 %v130
    %372 = vmatprep.mubr.f32.mxu0 %v32
    %373 = vmatmul.mubr.f32.gmra.mrb[0].mxu0 %v31
    %v374 = vpop.f32.mrb[0].mxu0
    %v375 = vadd.f32 %v305, %v374
    %v376 = vpop.f32.mrb[0].mxu0
    %377 = vdwg.mxu0
    %378 = vmatprep.subr.mxu0 0.0
    %379 = vmatpush1.msra.mxu0 %v131
    %380 = vmatprep.subr.mxu0 0.0
    %381 = vmatpush1.msra.mxu0 %v132
    %382 = vmatprep.subr.mxu0 0.0
    %383 = vmatpush1.msra.mxu0 %v133
    %384 = vmatprep.subr.mxu0 0.0
    %385 = vmatpush1.msra.mxu0 %v134
    %386 = vmatprep.subr.mxu0 0.0
    %387 = vmatpush1.msra.mxu0 %v135
    %388 = vmatprep.subr.mxu0 0.0
    %389 = vmatpush1.msra.mxu0 %v136
    %390 = vmatprep.subr.mxu0 0.0
    %391 = vmatpush1.msra.mxu0 %v137
    %392 = vmatprep.subr.mxu0 0.0
    %393 = vmatpush1.msra.mxu0 %v138
    %394 = vmatprep.subr.mxu0 0.0
    %395 = vmatpush1.msra.mxu0 %v139
    %396 = vmatprep.subr.mxu0 0.0
    %397 = vmatpush1.msra.mxu0 %v140
    %398 = vmatprep.subr.mxu0 0.0
    %399 = vmatpush1.msra.mxu0 %v141
    %400 = vmatprep.subr.mxu0 0.0
    %401 = vmatpush1.msra.mxu0 %v142
    %402 = vmatprep.subr.mxu0 0.0
    %403 = vmatpush1.msra.mxu0 %v143
    %404 = vmatprep.subr.mxu0 0.0
    %405 = vmatpush1.msra.mxu0 %v144
    %406 = vmatprep.subr.mxu0 0.0
    %407 = vmatpush1.msra.mxu0 %v145
    %408 = vmatprep.subr.mxu0 0.0
    %409 = vmatpush1.msra.mxu0 %v146
    %410 = vmatprep.subr.mxu0 0.0
    %411 = vmatpush1.msra.mxu0 %v147
    %412 = vmatprep.subr.mxu0 0.0
    %413 = vmatpush1.msra.mxu0 %v148
    %414 = vmatprep.subr.mxu0 0.0
    %415 = vmatpush1.msra.mxu0 %v149
    %416 = vmatprep.subr.mxu0 0.0
    %417 = vmatpush1.msra.mxu0 %v150
    %418 = vmatprep.subr.mxu0 0.0
    %419 = vmatpush1.msra.mxu0 %v151
    %420 = vmatprep.subr.mxu0 0.0
    %421 = vmatpush1.msra.mxu0 %v152
    %422 = vmatprep.subr.mxu0 0.0
    %423 = vmatpush1.msra.mxu0 %v153
    %424 = vmatprep.subr.mxu0 0.0
    %425 = vmatpush1.msra.mxu0 %v154
    %426 = vmatprep.subr.mxu0 0.0
    %427 = vmatpush1.msra.mxu0 %v155
    %428 = vmatprep.subr.mxu0 0.0
    %429 = vmatpush1.msra.mxu0 %v156
    %430 = vmatprep.subr.mxu0 0.0
    %431 = vmatpush1.msra.mxu0 %v157
    %432 = vmatprep.subr.mxu0 0.0
    %433 = vmatpush1.msra.mxu0 %v158
    %434 = vmatprep.subr.mxu0 0.0
    %435 = vmatpush1.msra.mxu0 %v159
    %436 = vmatprep.subr.mxu0 0.0
    %437 = vmatpush1.msra.mxu0 %v160
    %438 = vmatprep.subr.mxu0 0.0
    %439 = vmatpush1.msra.mxu0 %v161
    %440 = vmatprep.subr.mxu0 0.0
    %441 = vmatpush1.msra.mxu0 %v162
    %442 = vmatprep.mubr.f32.mxu0 %v34
    %443 = vmatmul.mubr.f32.gmra.mrb[0].mxu0 %v33
    %v444 = vpop.f32.mrb[0].mxu0
    %v445 = vadd.f32 %v375, %v444
    %v446 = vpop.f32.mrb[0].mxu0
    %447 = vdwg.mxu0
    %v448 = vmax.f32 %v445, 0.0
    %449 = vst [vmem:[%s3] sm:$0xff] %v448
    %v450 = vld [vmem:[#allocation2 + $0x408] sm:$0xff]
    %v451 = vld [vmem:[#allocation2 + $0x410] sm:$0xff]
    %v452 = vld [vmem:[#allocation2 + $0x418] sm:$0xff]
    %v453 = vld [vmem:[#allocation2 + $0x420] sm:$0xff]
    %v454 = vld [vmem:[#allocation2 + $0x428] sm:$0xff]
    %v455 = vld [vmem:[#allocation2 + $0x430] sm:$0xff]
    %v456 = vld [vmem:[#allocation2 + $0x438] sm:$0xff]
    %v457 = vld [vmem:[#allocation2 + $0x440] sm:$0xff]
    %v458 = vld [vmem:[#allocation2 + $0x448] sm:$0xff]
    %v459 = vld [vmem:[#allocation2 + $0x450] sm:$0xff]
    %v460 = vld [vmem:[#allocation2 + $0x458] sm:$0xff]
    %v461 = vld [vmem:[#allocation2 + $0x460] sm:$0xff]
    %v462 = vld [vmem:[#allocation2 + $0x468] sm:$0xff]
    %v463 = vld [vmem:[#allocation2 + $0x470] sm:$0xff]
    %v464 = vld [vmem:[#allocation2 + $0x478] sm:$0xff]
    %v465 = vld [vmem:[#allocation2 + $0x480] sm:$0xff]
    %v466 = vld [vmem:[#allocation2 + $0x488] sm:$0x1]
    %v467 = vlaneseq
    %v468 = vshrl.u32 %v467, 7
    %v469 = vsub.s32 0, %v468
    %v470 = vrot.slane %v466, %v469
    %471 = vmatprep.subr.mxu0 0.0
    %472 = vmatpush1.msra.mxu0 %v450
    %473 = vmatprep.subr.mxu0 0.0
    %474 = vmatpush1.msra.mxu0 %v451
    %475 = vmatprep.subr.mxu0 0.0
    %476 = vmatpush1.msra.mxu0 %v452
    %477 = vmatprep.subr.mxu0 0.0
    %478 = vmatpush1.msra.mxu0 %v453
    %479 = vmatprep.subr.mxu0 0.0
    %480 = vmatpush1.msra.mxu0 %v454
    %481 = vmatprep.subr.mxu0 0.0
    %482 = vmatpush1.msra.mxu0 %v455
    %483 = vmatprep.subr.mxu0 0.0
    %484 = vmatpush1.msra.mxu0 %v456
    %485 = vmatprep.subr.mxu0 0.0
    %486 = vmatpush1.msra.mxu0 %v457
    %487 = vmatprep.subr.mxu0 0.0
    %488 = vmatpush1.msra.mxu0 %v458
    %489 = vmatprep.subr.mxu0 0.0
    %490 = vmatpush1.msra.mxu0 %v459
    %491 = vmatprep.subr.mxu0 0.0
    %492 = vmatpush1.msra.mxu0 %v460
    %493 = vmatprep.subr.mxu0 0.0
    %494 = vmatpush1.msra.mxu0 %v461
    %495 = vmatprep.subr.mxu0 0.0
    %496 = vmatpush1.msra.mxu0 %v462
    %497 = vmatprep.subr.mxu0 0.0
    %498 = vmatpush1.msra.mxu0 %v463
    %499 = vmatprep.subr.mxu0 0.0
    %500 = vmatpush1.msra.mxu0 %v464
    %501 = vmatprep.subr.mxu0 0.0
    %502 = vmatpush1.msra.mxu0 %v465
    %503 = vmatprep.subr.mxu0 0.0
    %504 = vmatpush1.msra.mxu0 0.0
    %505 = vmatprep.subr.mxu0 0.0
    %506 = vmatpush1.msra.mxu0 0.0
    %507 = vmatprep.subr.mxu0 0.0
    %508 = vmatpush1.msra.mxu0 0.0
    %509 = vmatprep.subr.mxu0 0.0
    %510 = vmatpush1.msra.mxu0 0.0
    %511 = vmatprep.subr.mxu0 0.0
    %512 = vmatpush1.msra.mxu0 0.0
    %513 = vmatprep.subr.mxu0 0.0
    %514 = vmatpush1.msra.mxu0 0.0
    %515 = vmatprep.subr.mxu0 0.0
    %516 = vmatpush1.msra.mxu0 0.0
    %517 = vmatprep.subr.mxu0 0.0
    %518 = vmatpush1.msra.mxu0 0.0
    %519 = vmatprep.subr.mxu0 0.0
    %520 = vmatpush1.msra.mxu0 0.0
    %521 = vmatprep.subr.mxu0 0.0
    %522 = vmatpush1.msra.mxu0 0.0
    %523 = vmatprep.subr.mxu0 0.0
    %524 = vmatpush1.msra.mxu0 0.0
    %525 = vmatprep.subr.mxu0 0.0
    %526 = vmatpush1.msra.mxu0 0.0
    %527 = vmatprep.subr.mxu0 0.0
    %528 = vmatpush1.msra.mxu0 0.0
    %529 = vmatprep.subr.mxu0 0.0
    %530 = vmatpush1.msra.mxu0 0.0
    %531 = vmatprep.subr.mxu0 0.0
    %532 = vmatpush1.msra.mxu0 0.0
    %533 = vmatprep.subr.mxu0 0.0
    %534 = vmatpush1.msra.mxu0 0.0
    %535 = vmatprep.mubr.f32.mxu0 0.0
    %536 = vmatmul.mubr.f32.gmra.mrb[0].mxu0 %v448
    %v537 = vpop.f32.mrb[0].mxu0
    %v538 = vadd.f32 %v470, %v537
    %v539 = vpop.f32.mrb[0].mxu0
    %540 = vdwg.mxu0
    %541 = vmax.xlane.f32.xlu0 %v538
    %v542 = vpop.xlane.xlu0 %541
    %v543 = vsub.f32 %v538, %v542
    %v544 = vmul.f32 %v543, 1.442695
    %v545 = vpow.pop %v544
    %546 = vadd.xlane.f32.xlu0 %v545
    %v547 = vpop.xlane.xlu0 %546
    %v548 = vrcp.pop %v547
    %v549 = vmul.f32 %v547, %v548
    %v550 = vsub.f32 2.0, %v549
    %v551 = vmul.f32 %v548, %v550
    %v552 = vmul.f32 %v545, %v551
    %553 = vst [vmem:[%s2] sm:$0xff] %v552
    // Predicated region
    $region14: #{_fused_forward.1} parent=1 // pred_check
      _
    $region15: #{_fused_forward.1} parent=1 // pred_check_branch
      %555 = sbr.rel (0) target = $region17
    $region16: #{_fused_forward.1} parent=1 // pred_region
      _
    $region17: #{_fused_forward.1} parent=1 // pred_fallthru
      _
    // Predicated region
    $region18: #{_fused_forward.1} parent=1 // pred_check
      _
    $region19: #{_fused_forward.1} parent=1 // pred_check_branch
      %557 = sbr.rel (0) target = $region21
    $region20: #{_fused_forward.1} parent=1 // pred_region
      _
    $region21: #{_fused_forward.1} parent=1 // pred_fallthru
      _
    // Predicated region
    $region22: #{_fused_forward.1} parent=1 // pred_check
      _
    $region23: #{_fused_forward.1} parent=1 // pred_check_branch
      %559 = sbr.rel (0) target = $region25
    $region24: #{_fused_forward.1} parent=1 // pred_region
      _
    $region25: #{_fused_forward.1} parent=1 // pred_fallthru
      _
    // Predicated region
    $region26: #{_fused_forward.1} parent=1 // pred_check
      _
    $region27: #{_fused_forward.1} parent=1 // pred_check_branch
      %561 = sbr.rel (0) target = $region29
    $region28: #{_fused_forward.1} parent=1 // pred_region
      _
    $region29: #{_fused_forward.1} parent=1 // pred_fallthru
      _
    %562 = vsyncpa [#allocation3], 1

</llo_original>
